<compile_context>
chip_gen: v6e
topology: v6e:2x2x1
jax: 0.10.0
libtpu: 0.0.40
codegen_flags: <defaults>
</compile_context>

<pallas_src>
import math

import jax
import jax.numpy as jnp
from jax.experimental import pallas as pl
from jax.experimental.pallas import tpu as pltpu


def _round_up(x, m):
    return (x + m - 1) // m * m


def _vmem_budget_bytes():
    """Generation-aware VMEM budget (leave headroom under physical capacity)."""
    cap = 64 * 2**20  # conservative default: v7x per-TensorCore VMEM
    try:
        info = pltpu.get_tpu_info()
        cap = int(getattr(info, "vmem_capacity_bytes", cap)) or cap
    except Exception:
        pass
    return int(0.75 * cap)


def _k1_vmem_bytes(tm, tn, d_pad, e_bytes):
    """Rough double-buffered VMEM footprint of the matmul + online-softmax pass."""
    return (2 * tm * d_pad * 2        # x tile (bf16, double-buffered)
            + 2 * d_pad * tn * 2      # weight tile (bf16, double-buffered)
            + 2 * 8 * tn * 4          # bias tile (sublane-padded f32)
            + 2 * tm * tn * e_bytes   # streamed exp tile
            + 6 * tm * 128 * 4)       # m/l outputs + scratches (lane-padded)


def _k2_vmem_bytes(tm, tn, e_bytes, out_bytes):
    return 2 * tm * tn * (e_bytes + out_bytes) + 4 * tm * 128 * 4


def _proj_online_kernel(x_ref, w_ref, b_ref, e_ref, m_ref, l_ref, m_sc, l_sc):
    # x_ref: (tm, d_pad) bf16, w_ref: (d_pad, tn) bf16, b_ref: (1, tn) f32
    # e_ref: (tm, tn)            unnormalized exp(logit - running_max)
    # m_ref: (1, tm, 1) f32      running max after this vocab tile (per tile)
    # l_ref: (tm, 1)    f32      running denominator (final value is kept)
    # m_sc / l_sc: (tm, 1) f32   running-stat scratches
    j = pl.program_id(1)

    @pl.when(j == 0)
    def _():
        m_sc[...] = jnp.full(m_sc.shape, -jnp.inf, dtype=m_sc.dtype)
        l_sc[...] = jnp.zeros(l_sc.shape, dtype=l_sc.dtype)

    # bf16 MXU matmul with f32 accumulation; bias add in f32.
    logits = jnp.dot(x_ref[...], w_ref[...], preferred_element_type=jnp.float32)
    logits = logits + b_ref[...]

    # Online softmax update.
    m_prev = m_sc[...]
    m_new = jnp.maximum(m_prev, jnp.max(logits, axis=-1, keepdims=True))
    e = jnp.exp(logits - m_new)
    l_sc[...] = l_sc[...] * jnp.exp(m_prev - m_new) + jnp.sum(e, axis=-1, keepdims=True)
    m_sc[...] = m_new

    # Stream the unnormalized tile out; record this tile's running max.
    e_ref[...] = e.astype(e_ref.dtype)
    m_ref[0] = m_new
    l_ref[...] = l_sc[...]


def _rescale_kernel(e_ref, s_ref, o_ref):
    # e_ref: (tm, tn); s_ref: (1, tm, 1) per-(row, vocab-tile) rescale factor.
    o_ref[...] = (e_ref[...].astype(jnp.float32) * s_ref[0]).astype(o_ref.dtype)


def _projection_forward(x, w_p, b_p, *, vocab, d_model, tm, tn, out_dtype, budget):
    batch, seq, _ = x.shape
    M = batch * seq
    d_pad, v_pad = w_p.shape
    out_dtype = out_dtype or x.dtype  # bf16 recommended for large vocab
    e_dtype = out_dtype               # intermediate exp tiles share the dtype
    e_bytes = jnp.dtype(e_dtype).itemsize
    out_bytes = jnp.dtype(out_dtype).itemsize

    # Row tile: arithmetic intensity of the weight stream == tm, so push it
    # toward 256-512; keep >= 2 row tiles when possible so the leading
    # "parallel" axis shards across v7x's two TensorCores.
    if tm is None:
        tm_eff = min(512, _round_up(M, 8))
        if M > 8:
            tm_eff = min(tm_eff, _round_up((M + 1) // 2, 8))
    else:
        tm_eff = tm
    while tm_eff > 8 and _k1_vmem_bytes(tm_eff, tn, d_pad, e_bytes) > budget:
        tm_eff = max(8, _round_up(tm_eff // 2, 8))

    m_pad = _round_up(M, tm_eff)
    grid_i = m_pad // tm_eff
    grid_j = v_pad // tn

    # Per-call activation prep only (weights were prepared once).
    x2 = x.reshape(M, d_model).astype(jnp.bfloat16)
    if m_pad != M or d_pad != d_model:
        x2 = jnp.pad(x2, ((0, m_pad - M), (0, d_pad - d_model)))

    k1_limit = int(min(budget, max(32 * 2**20,
                                   int(1.25 * _k1_vmem_bytes(tm_eff, tn, d_pad, e_bytes)))))
    e, m_stats, l_fin = pl.pallas_call(
        _proj_online_kernel,
        out_shape=(
            jax.ShapeDtypeStruct((m_pad, v_pad), e_dtype),
            jax.ShapeDtypeStruct((grid_j, m_pad, 1), jnp.float32),
            jax.ShapeDtypeStruct((m_pad, 1), jnp.float32),
        ),
        grid_spec=pltpu.PrefetchScalarGridSpec(
            num_scalar_prefetch=0,
            grid=(grid_i, grid_j),
            in_specs=[
                pl.BlockSpec((tm_eff, d_pad), lambda i, j: (i, 0)),  # activations
                pl.BlockSpec((d_pad, tn), lambda i, j: (0, j)),      # weight tile
                pl.BlockSpec((1, tn), lambda i, j: (0, j)),          # bias tile
            ],
            out_specs=(
                pl.BlockSpec((tm_eff, tn), lambda i, j: (i, j)),     # exp tile (streamed)
                pl.BlockSpec((1, tm_eff, 1), lambda i, j: (j, i, 0)),  # per-tile running max
                pl.BlockSpec((tm_eff, 1), lambda i, j: (i, 0)),      # final denom (resident)
            ),
            scratch_shapes=[
                pltpu.VMEM((tm_eff, 1), jnp.float32),  # running max
                pltpu.VMEM((tm_eff, 1), jnp.float32),  # running denom
            ],
        ),
        compiler_params=pltpu.CompilerParams(
            dimension_semantics=("parallel", "arbitrary"),
            vmem_limit_bytes=k1_limit,
        ),
    )(x2, w_p, b_p)

    # Tiny per-row correction factors (exact divide, per review).
    m_fin = m_stats[-1]                                   # (m_pad, 1) global row max
    scale = jnp.exp(m_stats - m_fin[None]) / l_fin[None]  # (grid_j, m_pad, 1) f32

    k2_limit = int(min(budget, max(32 * 2**20,
                                   int(1.25 * _k2_vmem_bytes(tm_eff, tn, e_bytes, out_bytes)))))
    out = pl.pallas_call(
        _rescale_kernel,
        out_shape=jax.ShapeDtypeStruct((m_pad, v_pad), out_dtype),
        grid_spec=pltpu.PrefetchScalarGridSpec(
            num_scalar_prefetch=0,
            grid=(grid_i, grid_j),
            in_specs=[
                pl.BlockSpec((tm_eff, tn), lambda i, j: (i, j)),
                pl.BlockSpec((1, tm_eff, 1), lambda i, j: (j, i, 0)),
            ],
            out_specs=pl.BlockSpec((tm_eff, tn), lambda i, j: (i, j)),
        ),
        compiler_params=pltpu.CompilerParams(
            dimension_semantics=("parallel", "parallel"),
            vmem_limit_bytes=k2_limit,
        ),
    )(e, scale)

    return out[:M, :vocab].reshape(batch, seq, vocab)


def make_projection_fn(w, b, *, tm=None, tn=None, out_dtype=None):
    """One-time weight prep; returns fn(x) = softmax(x @ w + b, axis=-1).

    w: (d_model, vocab), b: (vocab,).  Pass out_dtype=jnp.bfloat16 for large
    vocabularies to halve output HBM traffic.
    """
    d_model, vocab = w.shape
    d_pad = _round_up(d_model, 128)
    budget = _vmem_budget_bytes()

    # Vocab tile: lane-dense, large enough to amortize per-grid-step overhead
    # and produce long contiguous weight DMAs; shrink if the double-buffered
    # weight tile would blow the (generation-aware) VMEM budget.
    if tn is None:
        tn = min(1024, _round_up(vocab, 128))
        while tn > 128 and _k1_vmem_bytes(512, tn, d_pad, 4) > budget:
            tn //= 2
    v_pad = _round_up(vocab, tn)

    # One-time: bf16 operands, D padded to a lane multiple, padded vocab
    # columns get a -1e30 bias so exp() == 0 for them.
    w_p = jnp.pad(w.astype(jnp.bfloat16),
                  ((0, d_pad - d_model), (0, v_pad - vocab)))
    b_p = jnp.pad(b.astype(jnp.float32), ((0, v_pad - vocab),),
                  constant_values=-1e30).reshape(1, v_pad)

    def fn(x):
        return _projection_forward(x, w_p, b_p, vocab=vocab, d_model=d_model,
                                   tm=tm, tn=tn, out_dtype=out_dtype,
                                   budget=budget)

    return fn


def projection_layer(x, w, b, **kwargs):
    """Convenience one-shot wrapper (prefer make_projection_fn in hot loops)."""
    return make_projection_fn(w, b, **kwargs)(x)


def init_params(key, d_model, vocab_size):
    # Mirror nn.Linear default init: U(-1/sqrt(d), 1/sqrt(d)).
    kw, kb = jax.random.split(key)
    bound = 1.0 / math.sqrt(d_model)
    # Stored as (d_model, vocab) == torch weight (vocab, d_model) transposed.
    w = jax.random.uniform(kw, (d_model, vocab_size), jnp.float32, -bound, bound)
    b = jax.random.uniform(kb, (vocab_size,), jnp.float32, -bound, bound)
    return w, b


if __name__ == "__main__":
    key = jax.random.PRNGKey(0)

    # (batch, seq, d_model, vocab, tm, tn): exercise single-tile, multi-tile
    # online softmax with ragged vocab padding, and non-128 d_model padding.
    configs = [
        (2, 8, 32, 128, None, None),
        (2, 8, 32, 1000, None, 256),
        (1, 4, 160, 384, None, 128),
    ]
    for batch, seq, d_model, vocab, tm, tn in configs:
        key, kx, kp = jax.random.split(key, 3)
        x = jax.random.normal(kx, (batch, seq, d_model), jnp.float32)
        w, b = init_params(kp, d_model, vocab)

        proj = make_projection_fn(w, b, tm=tm, tn=tn)  # one-time weight prep
        out = jax.block_until_ready(proj(x))

        # Reference: plain-JAX f32 forward of the PyTorch module.
        ref = jax.nn.softmax(jnp.einsum("bsd,dv->bsv", x, w) + b, axis=-1)
        assert out.shape == (batch, seq, vocab)
        assert out.dtype == x.dtype
        # bf16 matmul operands -> slightly looser tolerance.
        assert jnp.allclose(out, ref, atol=2e-3, rtol=1e-2), (
            f"mismatch for vocab={vocab}: max abs diff "
            f"{float(jnp.max(jnp.abs(out - ref)))}"
        )
        assert jnp.allclose(jnp.sum(out, axis=-1), 1.0, atol=2e-3)

    print("KERNEL_OK")
</pallas_src>

<mosaic_0001>
module attributes {stable_mosaic.version = 11 : i64} {
  func.func @_proj_online_kernel(%arg0: i32, %arg1: i32, %arg2: memref<8x128xbf16, #tpu.memory_space<vmem>>, %arg3: memref<128x128xbf16, #tpu.memory_space<vmem>>, %arg4: memref<1x128xf32, #tpu.memory_space<vmem>>, %arg5: memref<8x128xf32, #tpu.memory_space<vmem>>, %arg6: memref<1x8x1xf32, #tpu.memory_space<vmem>>, %arg7: memref<8x1xf32, #tpu.memory_space<vmem>>, %arg8: memref<8x1xf32, #tpu.memory_space<vmem>>, %arg9: memref<8x1xf32, #tpu.memory_space<vmem>>) attributes {dimension_semantics = [#tpu.dimension_semantics<parallel>, #tpu.dimension_semantics<arbitrary>], iteration_bounds = array<i64: 2, 1>, scalar_prefetch = 0 : i64, scratch_operands = 2 : i64, tpu.core_type = #tpu.core_type<tc>, window_params = [{transform_indices = @transform_0, window_bounds = array<i64: 8, 128>}, {transform_indices = @transform_1, window_bounds = array<i64: 128, 128>}, {transform_indices = @transform_2, window_bounds = array<i64: 1, 128>}, {transform_indices = @transform_3, window_bounds = array<i64: 8, 128>}, {transform_indices = @transform_4, window_bounds = array<i64: 1, 8, 1>}, {transform_indices = @transform_5, window_bounds = array<i64: 8, 1>}]} {
    %c0_i32 = arith.constant 0 : i32
    %0 = arith.cmpi eq, %arg1, %c0_i32 : i32
    %1 = arith.extui %0 : i1 to i32
    %c0_i32_0 = arith.constant 0 : i32
    %2 = arith.cmpi ne, %1, %c0_i32_0 : i32
    scf.if %2 {
      %cst_25 = arith.constant 0xFF800000 : f32
      %31 = vector.broadcast %cst_25 : f32 to vector<8x1xf32>
      %c0_26 = arith.constant 0 : index
      %c0_27 = arith.constant 0 : index
      %32 = vector.load %arg8[%c0_26, %c0_27] : memref<8x1xf32, #tpu.memory_space<vmem>>, vector<8x1xf32>
      tpu.vector_store %arg8[%c0_26, %c0_27], %31 {strides = array<i32>} : memref<8x1xf32, #tpu.memory_space<vmem>>, vector<8x1xf32>,
      %cst_28 = arith.constant 0.000000e+00 : f32
      %33 = vector.broadcast %cst_28 : f32 to vector<8x1xf32>
      %c0_29 = arith.constant 0 : index
      %c0_30 = arith.constant 0 : index
      %34 = vector.load %arg9[%c0_29, %c0_30] : memref<8x1xf32, #tpu.memory_space<vmem>>, vector<8x1xf32>
      tpu.vector_store %arg9[%c0_29, %c0_30], %33 {strides = array<i32>} : memref<8x1xf32, #tpu.memory_space<vmem>>, vector<8x1xf32>,
    } else {
    }
    %c0 = arith.constant 0 : index
    %c0_1 = arith.constant 0 : index
    %3 = vector.load %arg2[%c0, %c0_1] : memref<8x128xbf16, #tpu.memory_space<vmem>>, vector<8x128xbf16>
    %c0_2 = arith.constant 0 : index
    %c0_3 = arith.constant 0 : index
    %4 = vector.load %arg3[%c0_2, %c0_3] : memref<128x128xbf16, #tpu.memory_space<vmem>>, vector<128x128xbf16>
    %cst = arith.constant dense<0.000000e+00> : vector<8x128xf32>
    %5 = tpu.matmul %3, %4, %cst {dimension_numbers = #tpu.dot_dimension_numbers<[1], [0], [0], [1], [0, 0, 1, 1], [], []>} : vector<8x128xbf16>, vector<128x128xbf16>, vector<8x128xf32> -> vector<8x128xf32>
    %c0_4 = arith.constant 0 : index
    %c0_5 = arith.constant 0 : index
    %6 = vector.load %arg4[%c0_4, %c0_5] : memref<1x128xf32, #tpu.memory_space<vmem>>, vector<1x128xf32>
    %7 = vector.broadcast %6 : vector<1x128xf32> to vector<8x128xf32>
    %8 = arith.addf %5, %7 : vector<8x128xf32>
    %c0_6 = arith.constant 0 : index
    %c0_7 = arith.constant 0 : index
    %9 = vector.load %arg8[%c0_6, %c0_7] : memref<8x1xf32, #tpu.memory_space<vmem>>, vector<8x1xf32>
    %cst_8 = arith.constant dense<0xFF800000> : vector<8xf32>
    %10 = vector.multi_reduction <maximumf>, %8, %cst_8 [1] : vector<8x128xf32> to vector<8xf32>
    %11 = vector.shape_cast %10 : vector<8xf32> to vector<8x1xf32>
    %12 = arith.maximumf %9, %11 : vector<8x1xf32>
    %13 = vector.broadcast %12 : vector<8x1xf32> to vector<8x128xf32>
    %14 = arith.subf %8, %13 : vector<8x128xf32>
    %15 = math.exp %14 : vector<8x128xf32>
    %c0_9 = arith.constant 0 : index
    %c0_10 = arith.constant 0 : index
    %16 = vector.load %arg9[%c0_9, %c0_10] : memref<8x1xf32, #tpu.memory_space<vmem>>, vector<8x1xf32>
    %17 = arith.subf %9, %12 : vector<8x1xf32>
    %18 = math.exp %17 : vector<8x1xf32>
    %19 = arith.mulf %16, %18 : vector<8x1xf32>
    %cst_11 = arith.constant dense<0.000000e+00> : vector<8xf32>
    %20 = vector.multi_reduction <add>, %15, %cst_11 [1] : vector<8x128xf32> to vector<8xf32>
    %21 = vector.shape_cast %20 : vector<8xf32> to vector<8x1xf32>
    %22 = arith.addf %19, %21 : vector<8x1xf32>
    %c0_12 = arith.constant 0 : index
    %c0_13 = arith.constant 0 : index
    %23 = vector.load %arg9[%c0_12, %c0_13] : memref<8x1xf32, #tpu.memory_space<vmem>>, vector<8x1xf32>
    tpu.vector_store %arg9[%c0_12, %c0_13], %22 {strides = array<i32>} : memref<8x1xf32, #tpu.memory_space<vmem>>, vector<8x1xf32>,
    %c0_14 = arith.constant 0 : index
    %c0_15 = arith.constant 0 : index
    %24 = vector.load %arg8[%c0_14, %c0_15] : memref<8x1xf32, #tpu.memory_space<vmem>>, vector<8x1xf32>
    tpu.vector_store %arg8[%c0_14, %c0_15], %12 {strides = array<i32>} : memref<8x1xf32, #tpu.memory_space<vmem>>, vector<8x1xf32>,
    %c0_16 = arith.constant 0 : index
    %c0_17 = arith.constant 0 : index
    %25 = vector.load %arg5[%c0_16, %c0_17] : memref<8x128xf32, #tpu.memory_space<vmem>>, vector<8x128xf32>
    tpu.vector_store %arg5[%c0_16, %c0_17], %15 {strides = array<i32>} : memref<8x128xf32, #tpu.memory_space<vmem>>, vector<8x128xf32>,
    %c0_18 = arith.constant 0 : index
    %c0_19 = arith.constant 0 : index
    %c0_20 = arith.constant 0 : index
    %26 = vector.load %arg6[%c0_18, %c0_19, %c0_20] : memref<1x8x1xf32, #tpu.memory_space<vmem>>, vector<1x8x1xf32>
    %27 = vector.shape_cast %26 : vector<1x8x1xf32> to vector<8x1xf32>
    %28 = vector.shape_cast %12 : vector<8x1xf32> to vector<1x8x1xf32>
    tpu.vector_store %arg6[%c0_18, %c0_19, %c0_20], %28 {strides = array<i32>} : memref<1x8x1xf32, #tpu.memory_space<vmem>>, vector<1x8x1xf32>,
    %c0_21 = arith.constant 0 : index
    %c0_22 = arith.constant 0 : index
    %29 = vector.load %arg9[%c0_21, %c0_22] : memref<8x1xf32, #tpu.memory_space<vmem>>, vector<8x1xf32>
    %c0_23 = arith.constant 0 : index
    %c0_24 = arith.constant 0 : index
    %30 = vector.load %arg7[%c0_23, %c0_24] : memref<8x1xf32, #tpu.memory_space<vmem>>, vector<8x1xf32>
    tpu.vector_store %arg7[%c0_23, %c0_24], %29 {strides = array<i32>} : memref<8x1xf32, #tpu.memory_space<vmem>>, vector<8x1xf32>,
    return
  }
  func.func @transform_0(%arg0: i32, %arg1: i32) -> (i32, i32) {
    %c0_i32 = arith.constant 0 : i32
    %c0_i32_0 = arith.constant 0 : i32
    return %arg0, %c0_i32 : i32, i32
  }
  func.func @transform_1(%arg0: i32, %arg1: i32) -> (i32, i32) {
    %c0_i32 = arith.constant 0 : i32
    %c0_i32_0 = arith.constant 0 : i32
    return %c0_i32, %arg1 : i32, i32
  }
  func.func @transform_2(%arg0: i32, %arg1: i32) -> (i32, i32) {
    %c0_i32 = arith.constant 0 : i32
    %c0_i32_0 = arith.constant 0 : i32
    return %c0_i32, %arg1 : i32, i32
  }
  func.func @transform_3(%arg0: i32, %arg1: i32) -> (i32, i32) {
    %c0_i32 = arith.constant 0 : i32
    return %arg0, %arg1 : i32, i32
  }
  func.func @transform_4(%arg0: i32, %arg1: i32) -> (i32, i32, i32) {
    %c0_i32 = arith.constant 0 : i32
    %c0_i32_0 = arith.constant 0 : i32
    return %arg1, %arg0, %c0_i32 : i32, i32, i32
  }
  func.func @transform_5(%arg0: i32, %arg1: i32) -> (i32, i32) {
    %c0_i32 = arith.constant 0 : i32
    %c0_i32_0 = arith.constant 0 : i32
    return %arg0, %c0_i32 : i32, i32
  }
}

</mosaic_0001>

<llo_original>
// kernel: tpu_custom_call.1
$region0: #{tpu_custom_call.1}
  #allocation0 [shape = 'u32[]', space=smem, size = 0x4, offset = 0x4, fixed_abs, tag = 'smem constant byte address 0x4 - core index']
  #allocation1 [shape = 'u32[144,128]{1,0:T(1,128)}', space=vmem, size = 0x12000, scoped, tag = 'internal scratch']
  #allocation2 [shape = 'f32[8,1]{1,0:T(8,128)}', space=vmem, size = 0x1000, scoped, tag = 'scratch operand']
  #allocation3 [shape = 'f32[8,1]{1,0:T(8,128)}', space=vmem, size = 0x1000, scoped, tag = 'scratch operand']
  %s0 = inlined_call_operand.hbm [shape: bf16[16,128], index: 0, kind: input, shape index: {}]
  %s1 = inlined_call_operand.hbm [shape: bf16[128,128], index: 1, kind: input, shape index: {}]
  %s2 = inlined_call_operand.vmem [shape: f32[1,128], index: 2, kind: input, shape index: {}]
  %s3 = inlined_call_operand.hbm [shape: f32[16,128], index: 3, kind: output, shape index: {0}]
  %s4 = inlined_call_operand.vmem [shape: f32[1,16,1], index: 4, kind: output, shape index: {1}]
  %s5 = inlined_call_operand.vmem [shape: f32[16,1], index: 5, kind: output, shape index: {2}]
  %6 = xla_tuple %s3, %s4, %s5
  %s7 = sld [smem:[#allocation0]]
  $region73: #{tpu_custom_call.1} parent=0
    _
  %s9 = ssub.s32 1, %s7
  %s10 = scalar_select 0, %s9, %s7
  $region1: #{tpu_custom_call.1} parent=0
    #allocation4 [shape = 'u8[4096]{0}', space=vmem, size = 0x1000, scoped, tag = 'input window, operand 0']
    #allocation5 [shape = 's32[2]{0}', space=sflag, size = 0x8, scoped, tag = 'scoped memory for tpu_custom_call.1']
    #allocation6 [shape = 's32[2]{0}', space=sflag, size = 0x8, scoped, tag = 'scoped memory for tpu_custom_call.1']
    #allocation7 [shape = 'u8[32768]{0}', space=vmem, size = 0x8000, scoped, tag = 'input window, operand 1, single buffered']
    #allocation8 [shape = 's32[1]{0}', space=sflag, size = 0x4, scoped, tag = 'scoped memory for tpu_custom_call.1']
    #allocation9 [shape = 'u8[8192]{0}', space=vmem, size = 0x2000, scoped, tag = 'output window, operand 0']
    %11 = vsyncpa [#allocation5], 0
    %s12 = scalar_lea.sflag [#allocation5], 1
    %13 = vsyncpa %s12, 0
    %14 = vsyncpa [#allocation8], 0
    %15 = vsyncpa [#allocation6], 0
    %s16 = scalar_lea.sflag [#allocation6], 1
    %17 = vsyncpa %s16, 0
    loop: start=0, step=1, limit=4
    $region2: #{tpu_custom_call.1} parent=1 // loop_pre_header
      _
    $region3: #{tpu_custom_call.1} parent=1 // loop_header
      %s19 = sphi 0, %s23
      %p20 = scmp.ge.s32.totalorder %s19, 4
      %s26 = sphi 0, %s38
      %s27 = sphi 0, %s34
      %s28 = sphi 0, %s26
      %s29 = sphi 0, %s27
      %s30 = sphi 0, %s28
      %s31 = sphi 0, %s29
      %s41 = sphi 0, %s43
      %s44 = sphi 0, %s41
      %s45 = sphi 0, %s44
      %s61 = sphi 0, %s45
      %s67 = sphi 0, %s69
      %s70 = sphi 0, %s67
      %s71 = sphi 0, %s70
      %s87 = sphi 0, %s71
      %s93 = sphi 0, %s95
      %s96 = sphi 0, %s93
      %s97 = sphi 0, %s96
      %s113 = sphi 0, %s97
      %s121 = sphi 0, %s123
      %s124 = sphi 0, %s121
      %s125 = sphi 0, %s124
      %s141 = sphi 0, %s125
      %s149 = sphi 0, %s151
      %s152 = sphi 0, %s149
      %s153 = sphi 0, %s152
      %s169 = sphi 0, %s153
      %s175 = sphi 0, %s177
      %s178 = sphi 0, %s175
      %s179 = sphi 0, %s178
      %s195 = sphi 0, %s179
    $region4: #{tpu_custom_call.1} parent=1 // loop_header_branch
      %22 = sbr.rel (%p20) target = $region8
    $region5: #{tpu_custom_call.1} parent=1 // loop_body
      %s24 = ssub.s32 %s19, 1
      %s25 = ssub.s32 %s19, 2
      %s32 = sadd.s32 1, %s27
      %p33 = scmp.ge.s32.totalorder %s32, 1
      %s34 = scalar_select %p33, 0, %s32
      %s35 = sadd.s32 1, %s26
      %s36 = scalar_select %p33, %s35, %s26
      %p37 = scmp.ge.s32.totalorder %s36, 2
      %s38 = scalar_select %p37, 0, %s36
      %s39 = ssub.s32 %s26, %s38
      %p40 = scmp.eq.s32.totalorder %s39, 0
      %s42 = sadd.s32 %s41, 1
      %s43 = scalar_select %p40, %s41, %s42
      %p46 = pneg %p40
      %p47 = scmp.eq.s32.totalorder %s19, 1
      %p48 = por %p46, %p47
      %p49 = scmp.ne.s32.totalorder %s41, %s44
      %p50 = scmp.eq.s32.totalorder %s19, 0
      %p51 = por %p49, %p50
      %p52 = scmp.ne.s32.totalorder %s41, %s44
      %p53 = scmp.eq.s32.totalorder %s24, 1
      %p54 = por %p52, %p53
      %p55 = scmp.ne.s32.totalorder %s44, %s45
      %p56 = scmp.eq.s32.totalorder %s24, 0
      %p57 = por %p55, %p56
      %p58 = scmp.ne.s32.totalorder %s44, %s45
      %p59 = scmp.eq.s32.totalorder %s25, 1
      %p60 = por %p58, %p59
      %p62 = scmp.ne.s32.totalorder %s45, %s61
      %p63 = scmp.eq.s32.totalorder %s25, 0
      %p64 = por %p62, %p63
      %s65 = ssub.s32 %s27, %s34
      %p66 = scmp.eq.s32.totalorder %s65, 0
      %s68 = sadd.s32 %s67, 1
      %s69 = scalar_select %p66, %s67, %s68
      %p72 = pneg %p66
      %p73 = scmp.eq.s32.totalorder %s19, 1
      %p74 = por %p72, %p73
      %p75 = scmp.ne.s32.totalorder %s67, %s70
      %p76 = scmp.eq.s32.totalorder %s19, 0
      %p77 = por %p75, %p76
      %p78 = scmp.ne.s32.totalorder %s67, %s70
      %p79 = scmp.eq.s32.totalorder %s24, 1
      %p80 = por %p78, %p79
      %p81 = scmp.ne.s32.totalorder %s70, %s71
      %p82 = scmp.eq.s32.totalorder %s24, 0
      %p83 = por %p81, %p82
      %p84 = scmp.ne.s32.totalorder %s70, %s71
      %p85 = scmp.eq.s32.totalorder %s25, 1
      %p86 = por %p84, %p85
      %p88 = scmp.ne.s32.totalorder %s71, %s87
      %p89 = scmp.eq.s32.totalorder %s25, 0
      %p90 = por %p88, %p89
      %s91 = ssub.s32 %s27, %s34
      %p92 = scmp.eq.s32.totalorder %s91, 0
      %s94 = sadd.s32 %s93, 1
      %s95 = scalar_select %p92, %s93, %s94
      %p98 = pneg %p92
      %p99 = scmp.eq.s32.totalorder %s19, 1
      %p100 = por %p98, %p99
      %p101 = scmp.ne.s32.totalorder %s93, %s96
      %p102 = scmp.eq.s32.totalorder %s19, 0
      %p103 = por %p101, %p102
      %p104 = scmp.ne.s32.totalorder %s93, %s96
      %p105 = scmp.eq.s32.totalorder %s24, 1
      %p106 = por %p104, %p105
      %p107 = scmp.ne.s32.totalorder %s96, %s97
      %p108 = scmp.eq.s32.totalorder %s24, 0
      %p109 = por %p107, %p108
      %p110 = scmp.ne.s32.totalorder %s96, %s97
      %p111 = scmp.eq.s32.totalorder %s25, 1
      %p112 = por %p110, %p111
      %p114 = scmp.ne.s32.totalorder %s97, %s113
      %p115 = scmp.eq.s32.totalorder %s25, 0
      %p116 = por %p114, %p115
      %s117 = ssub.s32 %s26, %s38
      %s118 = ssub.s32 %s27, %s34
      %s119 = sor.u32 %s117, %s118
      %p120 = scmp.eq.s32.totalorder %s119, 0
      %s122 = sadd.s32 %s121, 1
      %s123 = scalar_select %p120, %s121, %s122
      %p126 = pneg %p120
      %p127 = scmp.eq.s32.totalorder %s19, 1
      %p128 = por %p126, %p127
      %p129 = scmp.ne.s32.totalorder %s121, %s124
      %p130 = scmp.eq.s32.totalorder %s19, 0
      %p131 = por %p129, %p130
      %p132 = scmp.ne.s32.totalorder %s121, %s124
      %p133 = scmp.eq.s32.totalorder %s24, 1
      %p134 = por %p132, %p133
      %p135 = scmp.ne.s32.totalorder %s124, %s125
      %p136 = scmp.eq.s32.totalorder %s24, 0
      %p137 = por %p135, %p136
      %p138 = scmp.ne.s32.totalorder %s124, %s125
      %p139 = scmp.eq.s32.totalorder %s25, 1
      %p140 = por %p138, %p139
      %p142 = scmp.ne.s32.totalorder %s125, %s141
      %p143 = scmp.eq.s32.totalorder %s25, 0
      %p144 = por %p142, %p143
      %s145 = ssub.s32 %s27, %s34
      %s146 = ssub.s32 %s26, %s38
      %s147 = sor.u32 %s145, %s146
      %p148 = scmp.eq.s32.totalorder %s147, 0
      %s150 = sadd.s32 %s149, 1
      %s151 = scalar_select %p148, %s149, %s150
      %p154 = pneg %p148
      %p155 = scmp.eq.s32.totalorder %s19, 1
      %p156 = por %p154, %p155
      %p157 = scmp.ne.s32.totalorder %s149, %s152
      %p158 = scmp.eq.s32.totalorder %s19, 0
      %p159 = por %p157, %p158
      %p160 = scmp.ne.s32.totalorder %s149, %s152
      %p161 = scmp.eq.s32.totalorder %s24, 1
      %p162 = por %p160, %p161
      %p163 = scmp.ne.s32.totalorder %s152, %s153
      %p164 = scmp.eq.s32.totalorder %s24, 0
      %p165 = por %p163, %p164
      %p166 = scmp.ne.s32.totalorder %s152, %s153
      %p167 = scmp.eq.s32.totalorder %s25, 1
      %p168 = por %p166, %p167
      %p170 = scmp.ne.s32.totalorder %s153, %s169
      %p171 = scmp.eq.s32.totalorder %s25, 0
      %p172 = por %p170, %p171
      %s173 = ssub.s32 %s26, %s38
      %p174 = scmp.eq.s32.totalorder %s173, 0
      %s176 = sadd.s32 %s175, 1
      %s177 = scalar_select %p174, %s175, %s176
      %p180 = pneg %p174
      %p181 = scmp.eq.s32.totalorder %s19, 1
      %p182 = por %p180, %p181
      %p183 = scmp.ne.s32.totalorder %s175, %s178
      %p184 = scmp.eq.s32.totalorder %s19, 0
      %p185 = por %p183, %p184
      %p186 = scmp.ne.s32.totalorder %s175, %s178
      %p187 = scmp.eq.s32.totalorder %s24, 1
      %p188 = por %p186, %p187
      %p189 = scmp.ne.s32.totalorder %s178, %s179
      %p190 = scmp.eq.s32.totalorder %s24, 0
      %p191 = por %p189, %p190
      %p192 = scmp.ne.s32.totalorder %s178, %s179
      %p193 = scmp.eq.s32.totalorder %s25, 1
      %p194 = por %p192, %p193
      %p196 = scmp.ne.s32.totalorder %s179, %s195
      %p197 = scmp.eq.s32.totalorder %s25, 0
      %p198 = por %p196, %p197
      %p199 = scmp.le.s32.totalorder 1, %s19
      %p200 = scmp.lt.s32.totalorder %s19, 3
      %p201 = pnand %p199, %p200
      %p202 = pneg %p201
      // Predicated region
      $region9: #{tpu_custom_call.1} parent=5 // pred_check
        _
      $region10: #{tpu_custom_call.1} parent=5 // pred_check_branch
        %204 = sbr.rel (%p201) target = $region12
      $region11: #{tpu_custom_call.1} parent=5 // pred_region
        %s205 = ssub.s32 %s19, 1
        // Predicated region
        $region13: #{tpu_custom_call.1} parent=11 // pred_check
          %p206 = pneg %p83
        $region14: #{tpu_custom_call.1} parent=11 // pred_check_branch
          %208 = sbr.rel (%p206) target = $region16
        $region15: #{tpu_custom_call.1} parent=11 // pred_region
          %s210 = ssub.s32 1024, 1024
          %211 = vsyncadd [#allocation8], %s210
          %s212 = smul.addr %s29, 64
          %s213 = scalar_lea.hbm %s1, %s212
          %s214 = sshll.u32 [#allocation7], 4
          %s215 = int_to_ptr.vmem [resolvable:$true] %s214
          %220 = dma.hbm_to_vmem [thread:$0]  %s213, 1024, %s215, [#allocation8], 64, 64, 4
        $region16: #{tpu_custom_call.1} parent=11 // pred_fallthru
          _
        // Predicated region
        $region17: #{tpu_custom_call.1} parent=11 // pred_check
          %p221 = pneg %p109
        $region18: #{tpu_custom_call.1} parent=11 // pred_check_branch
          %223 = sbr.rel (%p221) target = $region20
        $region19: #{tpu_custom_call.1} parent=11 // pred_region
          %p224 = scmp.lt.s32.totalorder %s29, 0
          %s225 = scalar_select %p224, %s29, 0
          %s226 = scalar_lea.vmem %s2, %s225
        $region20: #{tpu_custom_call.1} parent=11 // pred_fallthru
          _
      $region12: #{tpu_custom_call.1} parent=5 // pred_fallthru
        _
      %p227 = scmp.lt.s32.totalorder %s19, 2
      // Predicated region
      $region21: #{tpu_custom_call.1} parent=5 // pred_check
        %p228 = pneg %p227
      $region22: #{tpu_custom_call.1} parent=5 // pred_check_branch
        %230 = sbr.rel (%p228) target = $region24
      $region23: #{tpu_custom_call.1} parent=5 // pred_region
        // Predicated region
        $region25: #{tpu_custom_call.1} parent=23 // pred_check
          %p231 = pneg %p51
        $region26: #{tpu_custom_call.1} parent=23 // pred_check_branch
          %233 = sbr.rel (%p231) target = $region28
        $region27: #{tpu_custom_call.1} parent=23 // pred_region
          %s234 = sand.u32 %s41, 1
          %s235 = scalar_lea.sflag [#allocation5], %s234
          %s236 = sand.u32 %s41, 1
          %s237 = smul.addr %s236, 4
          %s238 = scalar_lea.vmem [#allocation4], %s237
          %s240 = ssub.s32 64, 64
          %241 = vsyncadd %s235, %s240
          %s242 = smul.addr %s26, 64
          %s243 = scalar_lea.hbm %s0, %s242
          %s245 = sshll.u32 %s238, 4
          %s246 = int_to_ptr.vmem [resolvable:$true] %s245
          %248 = dma.hbm_to_vmem [thread:$0]  %s243, 64, %s246, %s235
        $region28: #{tpu_custom_call.1} parent=23 // pred_fallthru
          _
      $region24: #{tpu_custom_call.1} parent=5 // pred_fallthru
        _
      %p249 = scmp.le.s32.totalorder 1, %s19
      %p250 = scmp.lt.s32.totalorder %s19, 3
      %p251 = pnand %p249, %p250
      %p252 = pneg %p251
      // Predicated region
      $region29: #{tpu_custom_call.1} parent=5 // pred_check
        _
      $region30: #{tpu_custom_call.1} parent=5 // pred_check_branch
        %254 = sbr.rel (%p251) target = $region32
      $region31: #{tpu_custom_call.1} parent=5 // pred_region
        %s255 = ssub.s32 %s19, 1
        %s256 = sand.u32 %s44, 1
        %s257 = scalar_lea.sflag [#allocation5], %s256
        %s258 = sand.u32 %s44, 1
        %s259 = smul.addr %s258, 4
        %s260 = scalar_lea.vmem [#allocation4], %s259
        // Predicated region
        $region33: #{tpu_custom_call.1} parent=31 // pred_check
          %p261 = pneg %p57
        $region34: #{tpu_custom_call.1} parent=31 // pred_check_branch
          %263 = sbr.rel (%p261) target = $region36
        $region35: #{tpu_custom_call.1} parent=31 // pred_region
          %264 = dma.done %s257, 64
        $region36: #{tpu_custom_call.1} parent=31 // pred_fallthru
          _
        // Predicated region
        $region37: #{tpu_custom_call.1} parent=31 // pred_check
          %p265 = pneg %p83
        $region38: #{tpu_custom_call.1} parent=31 // pred_check_branch
          %267 = sbr.rel (%p265) target = $region40
        $region39: #{tpu_custom_call.1} parent=31 // pred_region
          %268 = dma.done [#allocation8], 1024
        $region40: #{tpu_custom_call.1} parent=31 // pred_fallthru
          _
        %s269 = sand.u32 %s44, 1
        %s270 = scalar_lea.sflag [#allocation5], %s269
        %s271 = sand.u32 %s44, 1
        %s272 = smul.addr %s271, 4
        %s273 = scalar_lea.vmem [#allocation4], %s272
        %p274 = pneg %p57
        %p275 = pneg %p54
        %p276 = pneg %p83
        %p277 = pneg %p80
        %p278 = scmp.lt.s32.totalorder %s29, 0
        %s279 = scalar_select %p278, %s29, 0
        %s280 = scalar_lea.vmem %s2, %s279
        %p281 = pneg %p109
        %p282 = pneg %p106
        %p283 = pneg %p137
        %p284 = pneg %p134
        %s285 = sand.u32 %s124, 1
        %s286 = scalar_lea.sflag [#allocation6], %s285
        %s287 = sand.u32 %s124, 1
        %s288 = smul.addr %s287, 8
        %s289 = scalar_lea.vmem [#allocation9], %s288
        %p290 = pneg %p165
        %p291 = pneg %p162
        %p292 = scmp.lt.s32.totalorder %s29, 0
        %s293 = scalar_select %p292, %s29, 0
        %p294 = scmp.lt.s32.totalorder %s28, 1
        %s295 = scalar_select %p294, %s28, 1
        %s296 = smul.addr %s293, 2
        %s297 = sadd.s32 %s295, %s296
        %s298 = smul.addr %s297, 8
        %s299 = scalar_lea.vmem %s4, %s298
        %p300 = pneg %p191
        %p301 = pneg %p188
        %p302 = scmp.lt.s32.totalorder %s28, 1
        %s303 = scalar_select %p302, %s28, 1
        %s304 = smul.addr %s303, 8
        %s305 = scalar_lea.vmem %s5, %s304
        %p306 = scmp.lt.s32.totalorder %s29, 0
        %s307 = scalar_select %p306, %s29, 0
        %s308 = scalar_lea.vmem %s2, %s307
        %p309 = scmp.lt.s32.totalorder %s29, 0
        %s310 = scalar_select %p309, %s29, 0
        %p311 = scmp.lt.s32.totalorder %s28, 1
        %s312 = scalar_select %p311, %s28, 1
        %s313 = smul.addr %s310, 2
        %s314 = sadd.s32 %s312, %s313
        %s315 = smul.addr %s314, 8
        %s316 = scalar_lea.vmem %s4, %s315
        %p317 = scmp.lt.s32.totalorder %s28, 1
        %s318 = scalar_select %p317, %s28, 1
        %s319 = smul.addr %s318, 8
        %s320 = scalar_lea.vmem %s5, %s319
        %p322 = scmp.eq.s32.totalorder %s29, 0
        // Predicated region
        $region41: #{tpu_custom_call.1} parent=31 // pred_check
          %p323 = pneg %p322
        $region42: #{tpu_custom_call.1} parent=31 // pred_check_branch
          %325 = sbr.rel (%p323) target = $region44
        $region43: #{tpu_custom_call.1} parent=31 // pred_region
          %vm326 = vcmask 7168
          %327 = vst.msk [vmem:[#allocation2] sm:$0xff] %vm326, -inf
          %328 = vst.msk [vmem:[#allocation3] sm:$0xff] %vm326, 0.0
        $region44: #{tpu_custom_call.1} parent=31 // pred_fallthru
          _
        %v329 = vld [vmem:[%s260] sm:$0xf]
        %v330 = vld [vmem:[#allocation7] sm:$0xf]
        %v331 = vld [vmem:[#allocation7 + $0x4] sm:$0xf]
        %v332 = vld [vmem:[#allocation7 + $0x8] sm:$0xf]
        %v333 = vld [vmem:[#allocation7 + $0xc] sm:$0xf]
        %v334 = vld [vmem:[#allocation7 + $0x10] sm:$0xf]
        %v335 = vld [vmem:[#allocation7 + $0x14] sm:$0xf]
        %v336 = vld [vmem:[#allocation7 + $0x18] sm:$0xf]
        %v337 = vld [vmem:[#allocation7 + $0x1c] sm:$0xf]
        %v338 = vld [vmem:[#allocation7 + $0x20] sm:$0xf]
        %v339 = vld [vmem:[#allocation7 + $0x24] sm:$0xf]
        %v340 = vld [vmem:[#allocation7 + $0x28] sm:$0xf]
        %v341 = vld [vmem:[#allocation7 + $0x2c] sm:$0xf]
        %v342 = vld [vmem:[#allocation7 + $0x30] sm:$0xf]
        %v343 = vld [vmem:[#allocation7 + $0x34] sm:$0xf]
        %v344 = vld [vmem:[#allocation7 + $0x38] sm:$0xf]
        %v345 = vld [vmem:[#allocation7 + $0x3c] sm:$0xf]
        %v346 = vld [vmem:[%s308] sm:$0x1]
        %v348 = vlaneseq
        %v349 = vshrl.u32 %v348, 7
        %v350 = vsub.s32 0, %v349
        %v351 = vrot.slane %v346, %v350
        %v369 = vunpack.c.l.b16 %v330
        %v370 = vunpack.c.l.b16 %v331
        %v371 = vunpack.c.l.b16 %v332
        %v372 = vunpack.c.l.b16 %v333
        %v373 = vunpack.c.l.b16 %v334
        %v374 = vunpack.c.l.b16 %v335
        %v375 = vunpack.c.l.b16 %v336
        %v376 = vunpack.c.l.b16 %v337
        %v377 = vunpack.c.l.b16 %v338
        %v378 = vunpack.c.l.b16 %v339
        %v379 = vunpack.c.l.b16 %v340
        %v380 = vunpack.c.l.b16 %v341
        %v381 = vunpack.c.l.b16 %v342
        %v382 = vunpack.c.l.b16 %v343
        %v383 = vunpack.c.l.b16 %v344
        %v384 = vunpack.c.l.b16 %v345
        %v385 = vpack.c.b16 %v370, %v369
        %v386 = vpack.c.b16 %v372, %v371
        %v387 = vpack.c.b16 %v374, %v373
        %v388 = vpack.c.b16 %v376, %v375
        %v389 = vpack.c.b16 %v378, %v377
        %v390 = vpack.c.b16 %v380, %v379
        %v391 = vpack.c.b16 %v382, %v381
        %v392 = vpack.c.b16 %v384, %v383
        %401 = vmatprep.subr.bf16.mxu0 0
        %402 = vmatpush1.bf16.msra.mxu0 %v392
        %403 = vmatprep.subr.bf16.mxu0 0
        %404 = vmatpush1.bf16.msra.mxu0 %v391
        %405 = vmatprep.subr.bf16.mxu0 0
        %406 = vmatpush1.bf16.msra.mxu0 %v390
        %407 = vmatprep.subr.bf16.mxu0 0
        %408 = vmatpush1.bf16.msra.mxu0 %v389
        %409 = vmatprep.subr.bf16.mxu0 0
        %410 = vmatpush1.bf16.msra.mxu0 %v388
        %411 = vmatprep.subr.bf16.mxu0 0
        %412 = vmatpush1.bf16.msra.mxu0 %v387
        %413 = vmatprep.subr.bf16.mxu0 0
        %414 = vmatpush1.bf16.msra.mxu0 %v386
        %415 = vmatprep.subr.bf16.mxu0 0
        %416 = vmatpush1.bf16.msra.mxu0 %v385
        %417 = vmatprep.subr.bf16.mxu0 0
        %418 = vmatpush2.bf16.msra.mxu0 0
        %419 = vmatprep.subr.bf16.mxu0 0
        %420 = vmatpush2.bf16.msra.mxu0 0
        %421 = vmatprep.subr.bf16.mxu0 0
        %422 = vmatpush2.bf16.msra.mxu0 0
        %423 = vmatprep.subr.bf16.mxu0 0
        %424 = vmatpush2.bf16.msra.mxu0 0
        %425 = vmatprep.subr.bf16.mxu0 0
        %426 = vmatpush2.bf16.msra.mxu0 0
        %427 = vmatprep.subr.bf16.mxu0 0
        %428 = vmatpush2.bf16.msra.mxu0 0
        %429 = vmatprep.subr.bf16.mxu0 0
        %430 = vmatpush2.bf16.msra.mxu0 0
        %431 = vmatprep.subr.bf16.mxu0 0
        %432 = vmatpush2.bf16.msra.mxu0 0
        %433 = vmatprep.mubr.bf16.mxu0 0
        %434 = vmatmul.mubr.bf16.gmra.mxu0 %v329
        %v435 = vpop.f32.mrf.mxu0
        %v436 = vadd.f32 %v351, %v435
        %v437 = vpop.f32.mrf.mxu0
        %v438 = vpop.f32.mrf.mxu0
        %v439 = vpop.f32.mrf.mxu0
        %440 = vdwg.mxu0
        %v441 = vld [vmem:[#allocation2] sm:$0xff]
        %442 = vmax.xlane.f32.xlu0 %v436
        %v443 = vpop.xlane.xlu0 %442
        %v444 = vmax.f32 %v441, %v443
        %446 = vset.pattern.permute.xlu0 0
        %447 = vperm.xlu0 %446, %v444
        %v448 = vpop.permute.xlu0 %447
        %v450 = vsub.f32 %v436, %v448
        %v451 = vmul.f32 %v450, 1.442695
        %v452 = vpow.pop %v451
        %v453 = vld [vmem:[#allocation3] sm:$0xff]
        %v454 = vsub.f32 %v441, %v444
        %v455 = vmul.f32 %v454, 1.442695
        %v456 = vpow.pop %v455
        %v457 = vmul.f32 %v453, %v456
        %458 = vadd.xlane.f32.xlu0 %v452
        %v459 = vpop.xlane.xlu0 %458
        %v460 = vadd.f32 %v457, %v459
        %vm461 = vcmask 7168
        %462 = vst.msk [vmem:[#allocation3] sm:$0xff] %vm461, %v460
        %463 = vst.msk [vmem:[#allocation2] sm:$0xff] %vm461, %v444
        %464 = vst [vmem:[%s289] sm:$0xff] %v452
        %465 = vst.msk [vmem:[%s316] sm:$0xff] %vm461, %v444
        %v466 = vld [vmem:[#allocation3] sm:$0xff]
        %467 = vst.msk [vmem:[%s320] sm:$0xff] %vm461, %v466
        %s468 = sand.u32 %s124, 1
        %s469 = scalar_lea.sflag [#allocation6], %s468
        %s470 = sand.u32 %s124, 1
        %s471 = smul.addr %s470, 8
        %s472 = scalar_lea.vmem [#allocation9], %s471
        %p473 = scmp.lt.s32.totalorder %s29, 0
        %s474 = scalar_select %p473, %s29, 0
        %p475 = scmp.lt.s32.totalorder %s28, 1
        %s476 = scalar_select %p475, %s28, 1
        %s477 = smul.addr %s474, 2
        %s478 = sadd.s32 %s476, %s477
        %s479 = smul.addr %s478, 8
        %s480 = scalar_lea.vmem %s4, %s479
        %p481 = scmp.lt.s32.totalorder %s28, 1
        %s482 = scalar_select %p481, %s28, 1
        %s483 = smul.addr %s482, 8
        %s484 = scalar_lea.vmem %s5, %s483
        // Predicated region
        $region45: #{tpu_custom_call.1} parent=31 // pred_check
          %p485 = pneg %p134
        $region46: #{tpu_custom_call.1} parent=31 // pred_check_branch
          %487 = sbr.rel (%p485) target = $region48
        $region47: #{tpu_custom_call.1} parent=31 // pred_region
          %s489 = ssub.s32 128, 128
          %490 = vsyncadd %s469, %s489
          %s491 = sadd.s32 %s29, %s28
          %s492 = smul.addr %s491, 128
          %s493 = scalar_lea.hbm %s3, %s492
          %s495 = sshll.u32 %s472, 4
          %s496 = int_to_ptr.vmem [resolvable:$true] %s495
          %498 = dma.vmem_to_hbm [thread:$0]  %s496, 128, %s493, %s469
        $region48: #{tpu_custom_call.1} parent=31 // pred_fallthru
          _
        // Predicated region
        $region49: #{tpu_custom_call.1} parent=31 // pred_check
          %p499 = pneg %p162
        $region50: #{tpu_custom_call.1} parent=31 // pred_check_branch
          %501 = sbr.rel (%p499) target = $region52
        $region51: #{tpu_custom_call.1} parent=31 // pred_region
          _
        $region52: #{tpu_custom_call.1} parent=31 // pred_fallthru
          _
        // Predicated region
        $region53: #{tpu_custom_call.1} parent=31 // pred_check
          %p502 = pneg %p188
        $region54: #{tpu_custom_call.1} parent=31 // pred_check_branch
          %504 = sbr.rel (%p502) target = $region56
        $region55: #{tpu_custom_call.1} parent=31 // pred_region
          _
        $region56: #{tpu_custom_call.1} parent=31 // pred_fallthru
          _
      $region32: #{tpu_custom_call.1} parent=5 // pred_fallthru
        _
      %p505 = scmp.le.s32.totalorder 2, %s19
      // Predicated region
      $region57: #{tpu_custom_call.1} parent=5 // pred_check
        %p506 = pneg %p505
      $region58: #{tpu_custom_call.1} parent=5 // pred_check_branch
        %508 = sbr.rel (%p506) target = $region60
      $region59: #{tpu_custom_call.1} parent=5 // pred_region
        %s509 = ssub.s32 %s19, 2
        // Predicated region
        $region61: #{tpu_custom_call.1} parent=59 // pred_check
          %p510 = pneg %p140
        $region62: #{tpu_custom_call.1} parent=59 // pred_check_branch
          %512 = sbr.rel (%p510) target = $region64
        $region63: #{tpu_custom_call.1} parent=59 // pred_region
          %s513 = sand.u32 %s125, 1
          %s514 = scalar_lea.sflag [#allocation6], %s513
          %s515 = sand.u32 %s125, 1
          %s516 = smul.addr %s515, 8
          %s517 = scalar_lea.vmem [#allocation9], %s516
          %518 = dma.done %s514, 128
        $region64: #{tpu_custom_call.1} parent=59 // pred_fallthru
          _
        // Predicated region
        $region65: #{tpu_custom_call.1} parent=59 // pred_check
          %p519 = pneg %p168
        $region66: #{tpu_custom_call.1} parent=59 // pred_check_branch
          %521 = sbr.rel (%p519) target = $region68
        $region67: #{tpu_custom_call.1} parent=59 // pred_region
          %p522 = scmp.lt.s32.totalorder %s31, 0
          %s523 = scalar_select %p522, %s31, 0
          %p524 = scmp.lt.s32.totalorder %s30, 1
          %s525 = scalar_select %p524, %s30, 1
          %s526 = smul.addr %s523, 2
          %s527 = sadd.s32 %s525, %s526
          %s528 = smul.addr %s527, 8
          %s529 = scalar_lea.vmem %s4, %s528
        $region68: #{tpu_custom_call.1} parent=59 // pred_fallthru
          _
        // Predicated region
        $region69: #{tpu_custom_call.1} parent=59 // pred_check
          %p530 = pneg %p194
        $region70: #{tpu_custom_call.1} parent=59 // pred_check_branch
          %532 = sbr.rel (%p530) target = $region72
        $region71: #{tpu_custom_call.1} parent=59 // pred_region
          %p533 = scmp.lt.s32.totalorder %s30, 1
          %s534 = scalar_select %p533, %s30, 1
          %s535 = smul.addr %s534, 8
          %s536 = scalar_lea.vmem %s5, %s535
        $region72: #{tpu_custom_call.1} parent=59 // pred_fallthru
          _
      $region60: #{tpu_custom_call.1} parent=5 // pred_fallthru
        _
    $region6: #{tpu_custom_call.1} parent=1 // loop_footer
      %s23 = sadd.s32 1, %s19
    $region7: #{tpu_custom_call.1} parent=1 // loop_footer_branch
      %18 = sbr.rel target = $region3
    $region8: #{tpu_custom_call.1} parent=1 // loop_exit
      _
    %537 = vsyncpa [#allocation5], 1
    %s538 = scalar_lea.sflag [#allocation5], 1
    %539 = vsyncpa %s538, 1
    %540 = vsyncpa [#allocation8], 1
    %541 = vsyncpa [#allocation6], 1
    %s542 = scalar_lea.sflag [#allocation6], 1
    %543 = vsyncpa %s542, 1

</llo_original>
